<compile_context>
chip_gen: v5e
topology: v5e:2x2
jax: 0.10.0
libtpu: 0.0.40
codegen_flags: <defaults>
</compile_context>

<pallas_src>
import jax
import jax.numpy as jnp
from jax.experimental import pallas as pl
from jax.experimental.pallas import tpu as pltpu

_K_SPLIT = 4096     # start tiling the K (=E) grid axis above this embedding dim
_LANE = 128
_SUBLANE = 8


def _round_up(x, m):
    return (x + m - 1) // m * m


def _largest_tile_divisor(total, target, unit):
    """Largest multiple of `unit` that divides `total` and is <= max(target, unit)."""
    t = max(unit, min(target, total) // unit * unit)
    while t > unit and total % t != 0:
        t -= unit
    return t


# ----------------------------- Pallas kernel --------------------------------
def _dummy_gpt_logits_kernel(tok_ref, pos_ref, w_ref, o_ref, acc_ref):
    # tok_ref : (B, TS, TK) bf16 gathered token embeddings
    # pos_ref : (TS, TK)    bf16 positional embeddings (broadcast over batch)
    # w_ref   : (TK, TN)    bf16 final-projection weight tile
    # o_ref   : (B, TS, TN) logits tile (out_dtype)
    # acc_ref : (B*TS, TN)  f32 accumulator scratch (lives across the K axis)
    k = pl.program_id(2)

    @pl.when(k == 0)
    def _():
        acc_ref[...] = jnp.zeros_like(acc_ref)

    # Fused positional add: f32 VPU add (safe on v5e which has no bf16 VALU),
    # then bf16 into the MXU.  Free filler under the MXU-bound matmul.
    x = (tok_ref[...].astype(jnp.float32)
         + pos_ref[...].astype(jnp.float32)[None]).astype(jnp.bfloat16)
    b, ts, tk = x.shape
    acc_ref[...] += jnp.dot(x.reshape(b * ts, tk), w_ref[...],
                            preferred_element_type=jnp.float32)

    @pl.when(k == pl.num_programs(2) - 1)
    def _():
        o_ref[...] = acc_ref[...].reshape(o_ref.shape).astype(o_ref.dtype)


# --------------------------- tile / VMEM selection ---------------------------
def _choose_tiles(B, S, E_pad, V_pad, out_itemsize):
    try:
        info = pltpu.get_tpu_info()
        vmem_cap = int(getattr(info, "vmem_capacity_bytes", 0)) or (64 << 20)
    except Exception:
        vmem_cap = 64 << 20                       # conservative (v7x-sized) fallback
    big_vmem = vmem_cap >= (96 << 20)             # v5e/v6e: 128 MiB; v7x: 64 MiB
    vmem_limit = int(vmem_cap * 0.85)             # ~108 MiB (v5e/v6e), ~54 MiB (v7x)
    budget = int(vmem_cap * 0.70)                 # headroom for Pallas internals

    # vocab tile: large on big-VMEM parts, must divide the (pre-padded) V_pad
    tn = _largest_tile_divisor(V_pad, 4096 if big_vmem else 1024, _LANE)

    # sequence tile: target MXU-sized M (= B*TS); full S when S is small so the
    # activations load once and stay VMEM-resident across all V tiles
    target_m = 512 if big_vmem else 256
    ts_cap = max(_SUBLANE, (target_m // max(B, 1)) // _SUBLANE * _SUBLANE)
    if S <= ts_cap:
        ts = S
    else:
        ts = ts_cap
        while ts > _SUBLANE and S % ts != 0:
            ts -= _SUBLANE
    s_pad = _round_up(S, ts)

    # K (=E) tile: full E when small; otherwise tile so VMEM is independent of E
    tk = E_pad if E_pad <= _K_SPLIT else _largest_tile_divisor(E_pad, 512, _LANE)

    def footprint(ts_, tk_, tn_):
        tok = 2 * B * ts_ * tk_ * 2          # double-buffered bf16 inputs
        pos = 2 * ts_ * tk_ * 2
        wgt = 2 * tk_ * tn_ * 2
        out = 2 * B * ts_ * tn_ * out_itemsize
        acc = B * ts_ * tn_ * 4
        return tok + pos + wgt + out + acc

    if footprint(ts, tk, tn) > budget and tk > 512 and E_pad % 512 == 0:
        tk = 512
    while footprint(ts, tk, tn) > budget and tn > _LANE:
        tn = _largest_tile_divisor(V_pad, tn - _LANE, _LANE)
    while footprint(ts, tk, tn) > budget and ts > _SUBLANE:
        ts = max(_SUBLANE, (ts // 2) // _SUBLANE * _SUBLANE)
        s_pad = _round_up(S, ts)

    return ts, s_pad, tk, tn, vmem_limit


# ---------------------- one-time parameter preparation ----------------------
def prepare_params(embed_table, pos_table, w_final_t):
    """One-time: cast to bf16 and pad so the per-call path never rewrites weights."""
    V, E = embed_table.shape
    e_pad = _round_up(E, 512) if E > _K_SPLIT else E     # only pad E when K-tiling
    v_pad = _round_up(V, _LANE)
    emb = embed_table.astype(jnp.bfloat16)
    pos = pos_table.astype(jnp.bfloat16)
    w = w_final_t.astype(jnp.bfloat16)
    if e_pad != E:
        emb = jnp.pad(emb, ((0, 0), (0, e_pad - E)))
        pos = jnp.pad(pos, ((0, 0), (0, e_pad - E)))
        w = jnp.pad(w, ((0, e_pad - E), (0, 0)))
    if v_pad != V:
        w = jnp.pad(w, ((0, 0), (0, v_pad - V)))
    return emb, pos, w, V


# ------------------------------ forward pass --------------------------------
def dummy_gpt_forward(in_idx, emb_bf, pos_bf, w_bf, vocab_size, *,
                      out_dtype=jnp.float32):
    """in_idx: (B, S) int32 token ids.  Returns (B, S, V) logits (out_dtype)."""
    B, S = in_idx.shape
    E_pad = emb_bf.shape[1]
    V_pad = w_bf.shape[1]
    out_itemsize = jnp.dtype(out_dtype).itemsize
    ts, s_pad, tk, tn, vmem_limit = _choose_tiles(B, S, E_pad, V_pad, out_itemsize)

    # --- XLA glue: data-dependent token-row gather (bf16 table -> half traffic).
    # TODO(synk): fuse the gather itself in-kernel (per-row DMA from an
    # HBM-resident table driven by scalar-prefetched token ids); the positional
    # add / matmul-input prep already happen inside the kernel.
    tok = jnp.take(emb_bf, in_idx, axis=0)                 # (B, S, E_pad) bf16
    pos = pos_bf[:S]                                       # (S, E_pad)    bf16
    if s_pad != S:
        tok = jnp.pad(tok, ((0, 0), (0, s_pad - S), (0, 0)))
        pos = jnp.pad(pos, ((0, s_pad - S), (0, 0)))

    # Grid: V tiles OUTER (weight reuse / v7x megacore split on disjoint weight
    # columns), S tiles middle, K (=E) tiles INNER (accumulator axis).
    grid = (V_pad // tn, s_pad // ts, E_pad // tk)

    cost = pl.CostEstimate(
        flops=int(2 * B * s_pad * E_pad * V_pad),
        transcendentals=0,
        bytes_accessed=int(B * s_pad * E_pad * 2 + s_pad * E_pad * 2
                           + E_pad * V_pad * 2 + B * s_pad * V_pad * out_itemsize),
    )

    out = pl.pallas_call(
        _dummy_gpt_logits_kernel,
        out_shape=jax.ShapeDtypeStruct((B, s_pad, V_pad), out_dtype),
        grid_spec=pltpu.PrefetchScalarGridSpec(
            num_scalar_prefetch=0,
            grid=grid,
            in_specs=[
                pl.BlockSpec((B, ts, tk), lambda n, s, k: (0, s, k)),   # token embeds
                pl.BlockSpec((ts, tk), lambda n, s, k: (s, k)),         # pos embeds
                pl.BlockSpec((tk, tn), lambda n, s, k: (k, n)),         # proj weight
            ],
            out_specs=pl.BlockSpec((B, ts, tn), lambda n, s, k: (0, s, n)),
            scratch_shapes=[pltpu.VMEM((B * ts, tn), jnp.float32)],
        ),
        compiler_params=pltpu.CompilerParams(
            # Only the V axis is "parallel": a v7x megacore split lands on
            # disjoint weight columns (no duplicated weight DMA); no-op on 1-TC
            # v5e/v6e.  K axis carries the accumulator -> must be "arbitrary".
            dimension_semantics=("parallel", "arbitrary", "arbitrary"),
            vmem_limit_bytes=vmem_limit,
        ),
        cost_estimate=cost,
    )(tok, pos, w_bf)

    return out[:, :S, :vocab_size]


# ----------------------------- parameter init --------------------------------
def init_params(key, cfg):
    k_emb, k_pos, k_fin = jax.random.split(key, 3)
    V, E, C = cfg["vocab_size"], cfg["emb_dim"], cfg["context_length"]
    # nn.Embedding default init: N(0, 1)
    embed_table = jax.random.normal(k_emb, (V, E), dtype=jnp.float32)
    pos_table = jax.random.normal(k_pos, (C, E), dtype=jnp.float32)
    # nn.Linear default init: U(-1/sqrt(fan_in), 1/sqrt(fan_in)); stored as (E, V)
    bound = 1.0 / (E ** 0.5)
    w_final_t = jax.random.uniform(
        k_fin, (E, V), minval=-bound, maxval=bound, dtype=jnp.float32)
    return embed_table, pos_table, w_final_t


# ---------------------------------- main -------------------------------------
if __name__ == "__main__":
    cfg = {
        "vocab_size": 128,
        "context_length": 16,
        "emb_dim": 32,
        "drop_rate": 0.1,   # dropout treated as eval-mode identity (no RNG mask).
        "n_layers": 2,      # DummyTransformerBlock is identity -> layer count is a no-op.
    }
    batch, seq_len = 2, 8

    key = jax.random.PRNGKey(0)
    k_params, k_idx = jax.random.split(key)
    embed_table, pos_table, w_final_t = init_params(k_params, cfg)
    in_idx = jax.random.randint(
        k_idx, (batch, seq_len), 0, cfg["vocab_size"], dtype=jnp.int32)

    # one-time prep (bf16 cast + padding) -- NOT part of the per-call path
    emb_bf, pos_bf, w_bf, vocab = prepare_params(embed_table, pos_table, w_final_t)

    logits = dummy_gpt_forward(in_idx, emb_bf, pos_bf, w_bf, vocab)
    jax.block_until_ready(logits)

    # --- reference checks ---
    # (1) exact-math mirror of the kernel's bf16-rounded operands, f32 accumulation
    tok_f = jnp.take(emb_bf, in_idx, axis=0).astype(jnp.float32)
    pos_f = pos_bf[:seq_len].astype(jnp.float32)
    x_bf = (tok_f + pos_f[None]).astype(jnp.bfloat16).astype(jnp.float32)
    ref_bf = jnp.einsum("bse,ev->bsv", x_bf,
                        w_bf[:, :vocab].astype(jnp.float32),
                        precision=jax.lax.Precision.HIGHEST)
    # (2) loose check vs the full-f32 PyTorch-equivalent math
    h = jnp.take(embed_table, in_idx, axis=0) + pos_table[:seq_len][None]
    ref_f32 = jnp.einsum("bse,ev->bsv", h, w_final_t,
                         precision=jax.lax.Precision.HIGHEST)

    assert logits.shape == (batch, seq_len, cfg["vocab_size"])
    assert jnp.allclose(logits, ref_bf, atol=2e-3, rtol=2e-3)
    assert jnp.allclose(logits, ref_f32, atol=5e-2, rtol=5e-2)

    print("KERNEL_OK")
</pallas_src>

<mosaic_0001>
module attributes {stable_mosaic.version = 11 : i64} {
  func.func @_dummy_gpt_logits_kernel(%arg0: i32, %arg1: i32, %arg2: i32, %arg3: memref<2x8x32xbf16, #tpu.memory_space<vmem>>, %arg4: memref<8x32xbf16, #tpu.memory_space<vmem>>, %arg5: memref<32x128xbf16, #tpu.memory_space<vmem>>, %arg6: memref<2x8x128xf32, #tpu.memory_space<vmem>>, %arg7: memref<16x128xf32, #tpu.memory_space<vmem>>) attributes {dimension_semantics = [#tpu.dimension_semantics<parallel>, #tpu.dimension_semantics<arbitrary>, #tpu.dimension_semantics<arbitrary>], iteration_bounds = array<i64: 1, 1, 1>, scalar_prefetch = 0 : i64, scratch_operands = 1 : i64, tpu.core_type = #tpu.core_type<tc>, window_params = [{transform_indices = @transform_0, window_bounds = array<i64: 2, 8, 32>}, {transform_indices = @transform_1, window_bounds = array<i64: 8, 32>}, {transform_indices = @transform_2, window_bounds = array<i64: 32, 128>}, {transform_indices = @transform_3, window_bounds = array<i64: 2, 8, 128>}]} {
    %c0_i32 = arith.constant 0 : i32
    %0 = arith.cmpi eq, %arg2, %c0_i32 : i32
    %1 = arith.extui %0 : i1 to i32
    %c0_i32_0 = arith.constant 0 : i32
    %2 = arith.cmpi ne, %1, %c0_i32_0 : i32
    scf.if %2 {
      %cst_13 = arith.constant 0.000000e+00 : f32
      %20 = vector.broadcast %cst_13 : f32 to vector<16x128xf32>
      %c0_14 = arith.constant 0 : index
      %c0_15 = arith.constant 0 : index
      %21 = vector.load %arg7[%c0_14, %c0_15] : memref<16x128xf32, #tpu.memory_space<vmem>>, vector<16x128xf32>
      tpu.vector_store %arg7[%c0_14, %c0_15], %20 {strides = array<i32>} : memref<16x128xf32, #tpu.memory_space<vmem>>, vector<16x128xf32>,
    } else {
    }
    %c0 = arith.constant 0 : index
    %c0_1 = arith.constant 0 : index
    %c0_2 = arith.constant 0 : index
    %3 = vector.load %arg3[%c0, %c0_1, %c0_2] : memref<2x8x32xbf16, #tpu.memory_space<vmem>>, vector<2x8x32xbf16>
    %4 = arith.extf %3 : vector<2x8x32xbf16> to vector<2x8x32xf32>
    %c0_3 = arith.constant 0 : index
    %c0_4 = arith.constant 0 : index
    %5 = vector.load %arg4[%c0_3, %c0_4] : memref<8x32xbf16, #tpu.memory_space<vmem>>, vector<8x32xbf16>
    %6 = arith.extf %5 : vector<8x32xbf16> to vector<8x32xf32>
    %7 = vector.shape_cast %6 : vector<8x32xf32> to vector<1x8x32xf32>
    %8 = vector.broadcast %7 : vector<1x8x32xf32> to vector<2x8x32xf32>
    %9 = arith.addf %4, %8 : vector<2x8x32xf32>
    %10 = arith.truncf %9 : vector<2x8x32xf32> to vector<2x8x32xbf16>
    %c0_5 = arith.constant 0 : index
    %c0_6 = arith.constant 0 : index
    %11 = vector.load %arg7[%c0_5, %c0_6] : memref<16x128xf32, #tpu.memory_space<vmem>>, vector<16x128xf32>
    %12 = vector.shape_cast %10 : vector<2x8x32xbf16> to vector<16x32xbf16>
    %c0_7 = arith.constant 0 : index
    %c0_8 = arith.constant 0 : index
    %13 = vector.load %arg5[%c0_7, %c0_8] : memref<32x128xbf16, #tpu.memory_space<vmem>>, vector<32x128xbf16>
    %cst = arith.constant dense<0.000000e+00> : vector<16x128xf32>
    %14 = tpu.matmul %12, %13, %cst {dimension_numbers = #tpu.dot_dimension_numbers<[1], [0], [0], [1], [0, 0, 1, 1], [], []>} : vector<16x32xbf16>, vector<32x128xbf16>, vector<16x128xf32> -> vector<16x128xf32>
    %15 = arith.addf %11, %14 : vector<16x128xf32>
    %c0_9 = arith.constant 0 : index
    %c0_10 = arith.constant 0 : index
    %16 = vector.load %arg7[%c0_9, %c0_10] : memref<16x128xf32, #tpu.memory_space<vmem>>, vector<16x128xf32>
    tpu.vector_store %arg7[%c0_9, %c0_10], %15 {strides = array<i32>} : memref<16x128xf32, #tpu.memory_space<vmem>>, vector<16x128xf32>,
    %c0_i32_11 = arith.constant 0 : i32
    %17 = arith.cmpi eq, %arg2, %c0_i32_11 : i32
    %18 = arith.extui %17 : i1 to i32
    %c0_i32_12 = arith.constant 0 : i32
    %19 = arith.cmpi ne, %18, %c0_i32_12 : i32
    scf.if %19 {
      %c0_13 = arith.constant 0 : index
      %c0_14 = arith.constant 0 : index
      %20 = vector.load %arg7[%c0_13, %c0_14] : memref<16x128xf32, #tpu.memory_space<vmem>>, vector<16x128xf32>
      %21 = vector.shape_cast %20 : vector<16x128xf32> to vector<2x8x128xf32>
      %c0_15 = arith.constant 0 : index
      %c0_16 = arith.constant 0 : index
      %c0_17 = arith.constant 0 : index
      %22 = vector.load %arg6[%c0_15, %c0_16, %c0_17] : memref<2x8x128xf32, #tpu.memory_space<vmem>>, vector<2x8x128xf32>
      tpu.vector_store %arg6[%c0_15, %c0_16, %c0_17], %21 {strides = array<i32>} : memref<2x8x128xf32, #tpu.memory_space<vmem>>, vector<2x8x128xf32>,
    } else {
    }
    return
  }
  func.func @transform_0(%arg0: i32, %arg1: i32, %arg2: i32) -> (i32, i32, i32) {
    %c0_i32 = arith.constant 0 : i32
    %c0_i32_0 = arith.constant 0 : i32
    return %c0_i32, %arg1, %arg2 : i32, i32, i32
  }
  func.func @transform_1(%arg0: i32, %arg1: i32, %arg2: i32) -> (i32, i32) {
    %c0_i32 = arith.constant 0 : i32
    return %arg1, %arg2 : i32, i32
  }
  func.func @transform_2(%arg0: i32, %arg1: i32, %arg2: i32) -> (i32, i32) {
    %c0_i32 = arith.constant 0 : i32
    return %arg2, %arg0 : i32, i32
  }
  func.func @transform_3(%arg0: i32, %arg1: i32, %arg2: i32) -> (i32, i32, i32) {
    %c0_i32 = arith.constant 0 : i32
    %c0_i32_0 = arith.constant 0 : i32
    return %c0_i32, %arg1, %arg0 : i32, i32, i32
  }
}

</mosaic_0001>

<llo_original>
// kernel: tpu_custom_call.1
$region0: #{tpu_custom_call.1}
  #allocation0 [shape = 'u32[]', space=smem, size = 0x4, offset = 0x4, fixed_abs, tag = 'smem constant byte address 0x4 - core index']
  #allocation1 [shape = 'u32[72,128]{1,0:T(1,128)}', space=vmem, size = 0x9000, scoped, tag = 'internal scratch']
  #allocation2 [shape = 'f32[16,128]{1,0:T(8,128)}', space=vmem, size = 0x2000, scoped, tag = 'scratch operand']
  %s0 = inlined_call_operand.hbm [shape: bf16[2,8,32], index: 0, kind: input, shape index: {}]
  %s1 = inlined_call_operand.hbm [shape: bf16[8,32], index: 1, kind: input, shape index: {}]
  %s2 = inlined_call_operand.hbm [shape: bf16[32,128], index: 2, kind: input, shape index: {}]
  %s3 = inlined_call_operand.hbm [shape: f32[2,8,128], index: 3, kind: output, shape index: {}]
  %s4 = sld [smem:[#allocation0]]
  $region42: #{tpu_custom_call.1} parent=0
    _
  %s6 = ssub.s32 1, %s4
  %s7 = scalar_select 0, %s6, %s4
  $region1: #{tpu_custom_call.1} parent=0
    #allocation3 [shape = 'u8[4096]{0}', space=vmem, size = 0x1000, scoped, tag = 'input window, operand 0, single buffered']
    #allocation4 [shape = 's32[1]{0}', space=sflag, size = 0x4, scoped, tag = 'scoped memory for tpu_custom_call.1']
    #allocation5 [shape = 's32[1]{0}', space=sflag, size = 0x4, scoped, tag = 'scoped memory for tpu_custom_call.1']
    #allocation6 [shape = 'u8[2048]{0}', space=vmem, size = 0x800, scoped, tag = 'input window, operand 1, single buffered']
    #allocation7 [shape = 's32[1]{0}', space=sflag, size = 0x4, scoped, tag = 'scoped memory for tpu_custom_call.1']
    #allocation8 [shape = 'u8[8192]{0}', space=vmem, size = 0x2000, scoped, tag = 'input window, operand 2, single buffered']
    #allocation9 [shape = 'u8[8192]{0}', space=vmem, size = 0x2000, scoped, tag = 'output window, operand 0, single buffered']
    %8 = vsyncpa [#allocation4], 0
    %9 = vsyncpa [#allocation7], 0
    %10 = vsyncpa [#allocation5], 0
    // Predicated region
    $region2: #{tpu_custom_call.1} parent=1 // pred_check
      _
    $region3: #{tpu_custom_call.1} parent=1 // pred_check_branch
      %12 = sbr.rel (0) target = $region5
    $region4: #{tpu_custom_call.1} parent=1 // pred_region
      %14 = vsyncadd [#allocation4], 0
      %s15 = sshll.u32 %s0, 4
      %s16 = int_to_ptr.hbm [resolvable:$true] %s15
      %s17 = sshll.u32 [#allocation3], 4
      %s18 = int_to_ptr.vmem [resolvable:$true] %s17
      %23 = dma.hbm_to_vmem [thread:$0]  %s16, 128, %s18, [#allocation4], 64, 64, 4
    $region5: #{tpu_custom_call.1} parent=1 // pred_fallthru
      _
    // Predicated region
    $region6: #{tpu_custom_call.1} parent=1 // pred_check
      _
    $region7: #{tpu_custom_call.1} parent=1 // pred_check_branch
      %25 = sbr.rel (0) target = $region9
    $region8: #{tpu_custom_call.1} parent=1 // pred_region
      %27 = vsyncadd [#allocation7], 0
      %s29 = sshll.u32 %s1, 4
      %s30 = int_to_ptr.hbm [resolvable:$true] %s29
      %s31 = sshll.u32 [#allocation6], 4
      %s32 = int_to_ptr.vmem [resolvable:$true] %s31
      %34 = dma.hbm_to_vmem [thread:$0]  %s30, 64, %s32, [#allocation7]
    $region9: #{tpu_custom_call.1} parent=1 // pred_fallthru
      _
    // Predicated region
    $region10: #{tpu_custom_call.1} parent=1 // pred_check
      _
    $region11: #{tpu_custom_call.1} parent=1 // pred_check_branch
      %36 = sbr.rel (0) target = $region13
    $region12: #{tpu_custom_call.1} parent=1 // pred_region
      %38 = vsyncadd [#allocation7], 0
      %s39 = sshll.u32 %s2, 4
      %s40 = int_to_ptr.hbm [resolvable:$true] %s39
      %s41 = sshll.u32 [#allocation8], 4
      %s42 = int_to_ptr.vmem [resolvable:$true] %s41
      %47 = dma.hbm_to_vmem [thread:$0]  %s40, 256, %s42, [#allocation7], 64, 64, 4
    $region13: #{tpu_custom_call.1} parent=1 // pred_fallthru
      _
    // Predicated region
    $region14: #{tpu_custom_call.1} parent=1 // pred_check
      _
    $region15: #{tpu_custom_call.1} parent=1 // pred_check_branch
      %49 = sbr.rel (0) target = $region17
    $region16: #{tpu_custom_call.1} parent=1 // pred_region
      %51 = dma.done [#allocation4], 128
    $region17: #{tpu_custom_call.1} parent=1 // pred_fallthru
      _
    // Predicated region
    $region18: #{tpu_custom_call.1} parent=1 // pred_check
      _
    $region19: #{tpu_custom_call.1} parent=1 // pred_check_branch
      %53 = sbr.rel (0) target = $region21
    $region20: #{tpu_custom_call.1} parent=1 // pred_region
      %55 = dma.done [#allocation7], 64
    $region21: #{tpu_custom_call.1} parent=1 // pred_fallthru
      _
    // Predicated region
    $region22: #{tpu_custom_call.1} parent=1 // pred_check
      _
    $region23: #{tpu_custom_call.1} parent=1 // pred_check_branch
      %57 = sbr.rel (0) target = $region25
    $region24: #{tpu_custom_call.1} parent=1 // pred_region
      %59 = dma.done [#allocation7], 256
    $region25: #{tpu_custom_call.1} parent=1 // pred_fallthru
      _
    %p61 = scmp.eq.s32.totalorder 0, 0
    // Predicated region
    $region26: #{tpu_custom_call.1} parent=1 // pred_check
      %p62 = pneg %p61
    $region27: #{tpu_custom_call.1} parent=1 // pred_check_branch
      %64 = sbr.rel (%p62) target = $region29
    $region28: #{tpu_custom_call.1} parent=1 // pred_region
      %65 = vst [vmem:[#allocation2] sm:$0xff] 0.0
      %66 = vst [vmem:[#allocation2 + $0x8] sm:$0xff] 0.0
    $region29: #{tpu_custom_call.1} parent=1 // pred_fallthru
      _
    %v67 = vld [vmem:[#allocation3] sm:$0xf]
    %v68 = vld [vmem:[#allocation3 + $0x4] sm:$0xf]
    %v69 = vunpack.c.l.bf16 %v67
    %v70 = vunpack.c.l.bf16 %v68
    %v71 = vld [vmem:[#allocation6] sm:$0xf]
    %v72 = vunpack.c.l.bf16 %v71
    %v73 = vadd.f32 %v69, %v72
    %v74 = vadd.f32 %v70, %v72
    %v75 = vpack.c.bf16 %v73, %v73
    %v76 = vpack.c.bf16 %v74, %v74
    %v77 = vld [vmem:[#allocation2] sm:$0xff]
    %v78 = vld [vmem:[#allocation2 + $0x8] sm:$0xff]
    %v79 = vld [vmem:[#allocation8] sm:$0xf]
    %v80 = vld [vmem:[#allocation8 + $0x4] sm:$0xf]
    %v81 = vld [vmem:[#allocation8 + $0x8] sm:$0xf]
    %v82 = vld [vmem:[#allocation8 + $0xc] sm:$0xf]
    %v85 = vunpack.c.l.b16 %v75
    %v86 = vunpack.c.l.b16 %v76
    %v87 = vpack.c.b16 %v86, %v85
    %v92 = vunpack.c.l.b16 %v79
    %v93 = vunpack.c.l.b16 %v80
    %v94 = vunpack.c.l.b16 %v81
    %v95 = vunpack.c.l.b16 %v82
    %v96 = vpack.c.b16 %v93, %v92
    %v97 = vpack.c.b16 %v95, %v94
    %vm100 = vcmask 261120
    %v102 = vsel %vm100, %v87, 0
    %104 = vmatpush.bf16.msra.mxu0 0
    %105 = vmatpush.bf16.msra.mxu0 0
    %106 = vmatpush.bf16.msra.mxu0 0
    %107 = vmatpush.bf16.msra.mxu0 0
    %108 = vmatpush.bf16.msra.mxu0 0
    %109 = vmatpush.bf16.msra.mxu0 0
    %110 = vmatpush.bf16.msra.mxu0 %v97
    %111 = vmatpush.bf16.msra.mxu0 %v96
    %112 = vmatmul.bf16.gmra.mxu0 %v102
    %v113 = vpop.f32.mrf.mxu0
    %v114 = vadd.f32 0.0, %v113
    %v115 = vpop.f32.mrf.mxu0
    %v116 = vadd.f32 0.0, %v115
    %117 = vdwg.mxu0
    %v118 = vadd.f32 %v77, %v114
    %v119 = vadd.f32 %v78, %v116
    %120 = vst [vmem:[#allocation2] sm:$0xff] %v118
    %121 = vst [vmem:[#allocation2 + $0x8] sm:$0xff] %v119
    // Predicated region
    $region30: #{tpu_custom_call.1} parent=1 // pred_check
      %p122 = pneg %p61
    $region31: #{tpu_custom_call.1} parent=1 // pred_check_branch
      %124 = sbr.rel (%p122) target = $region33
    $region32: #{tpu_custom_call.1} parent=1 // pred_region
      %v125 = vld [vmem:[#allocation2] sm:$0xff]
      %v126 = vld [vmem:[#allocation2 + $0x8] sm:$0xff]
      %127 = vst [vmem:[#allocation9] sm:$0xff] %v125
      %128 = vst [vmem:[#allocation9 + $0x8] sm:$0xff] %v126
    $region33: #{tpu_custom_call.1} parent=1 // pred_fallthru
      _
    // Predicated region
    $region34: #{tpu_custom_call.1} parent=1 // pred_check
      _
    $region35: #{tpu_custom_call.1} parent=1 // pred_check_branch
      %130 = sbr.rel (0) target = $region37
    $region36: #{tpu_custom_call.1} parent=1 // pred_region
      %132 = vsyncadd [#allocation5], 0
      %s133 = sshll.u32 [#allocation9], 4
      %s134 = int_to_ptr.vmem [resolvable:$true] %s133
      %s135 = sshll.u32 %s3, 4
      %s136 = int_to_ptr.hbm [resolvable:$true] %s135
      %141 = dma.vmem_to_hbm [thread:$0]  %s134, 256, %s136, [#allocation5], 128, 128, 8
    $region37: #{tpu_custom_call.1} parent=1 // pred_fallthru
      _
    // Predicated region
    $region38: #{tpu_custom_call.1} parent=1 // pred_check
      _
    $region39: #{tpu_custom_call.1} parent=1 // pred_check_branch
      %143 = sbr.rel (0) target = $region41
    $region40: #{tpu_custom_call.1} parent=1 // pred_region
      %145 = dma.done [#allocation5], 256
    $region41: #{tpu_custom_call.1} parent=1 // pred_fallthru
      _
    %146 = vsyncpa [#allocation4], 1
    %147 = vsyncpa [#allocation7], 1
    %148 = vsyncpa [#allocation5], 1

</llo_original>
